<compile_context>
chip_gen: v7x
topology: tpu7x:2x2x1
jax: 0.10.0
libtpu: 0.0.40
codegen_flags: <defaults>
</compile_context>

<pallas_src>
import jax
import jax.numpy as jnp
from jax.experimental import pallas as pl
from jax.experimental.pallas import tpu as pltpu

_LANES = 128  # lane width — pad the curvature vector to a multiple of this


def _softplus_kernel(v_ref, o_ref):
    # Numerically stable softplus: max(x, 0) + log1p(exp(-|x|)).
    # Matches torch.nn.functional.softplus(beta=1) to float precision,
    # including large-x behavior (no overflow, exact linear tail).
    x = v_ref[...]
    o_ref[...] = jnp.maximum(x, 0.0) + jnp.log1p(jnp.exp(-jnp.abs(x)))


def curvature_forward_batched(values: jax.Array) -> jax.Array:
    """Softplus over a vector of per-layer curvature parameters.

    One kernel launch for all layers: values are packed into a lane-dense
    (1, padded_N) f32 tile (padded_N a multiple of 128) so both the load and
    the store are unmasked lane-dense vector ops and the launch/DMA overhead
    is amortized across layers.

    Args:
        values: (N,) float32 raw curvature parameters.
    Returns:
        (N,) float32 curvatures = softplus(values).
    """
    values = jnp.asarray(values, jnp.float32)
    (n,) = values.shape
    padded = ((n + _LANES - 1) // _LANES) * _LANES
    v2d = jnp.pad(values, (0, padded - n)).reshape(1, padded)
    out = pl.pallas_call(
        _softplus_kernel,
        out_shape=jax.ShapeDtypeStruct((1, padded), jnp.float32),
        in_specs=[pl.BlockSpec((1, padded), lambda: (0, 0))],
        out_specs=pl.BlockSpec((1, padded), lambda: (0, 0)),
    )(v2d)
    return out[0, :n]


def curvature_forward(value: jax.Array) -> jax.Array:
    """Exact module semantics: 0-d softplus(value). N=1 case of the batched path."""
    v = jnp.reshape(jnp.asarray(value, jnp.float32), (1,))
    return curvature_forward_batched(v)[0]  # 0-d f32, matching torch's output


def _curvature_scale_kernel(c_ref, x_ref, o_ref):
    # c_ref: RAW curvature parameter in SMEM, shape (1,).  Softplus is computed
    # inside the consumer body on the broadcasted vreg (EUP exp + log1p hide
    # under the consumer's VPU/MXU work).
    x = x_ref[...]
    v = jnp.full_like(x, c_ref[0])
    c = jnp.maximum(v, 0.0) + jnp.log1p(jnp.exp(-jnp.abs(v)))
    o_ref[...] = x * c


def curvature_scaled(value: jax.Array, x: jax.Array) -> jax.Array:
    """Fused-consumer demo: y = softplus(value) * x in a single kernel launch.

    The raw scalar travels via SMEM (no HBM->VMEM tile DMA for 4 bytes, no
    standalone curvature kernel).  Stand-in for fusing the curvature into
    expmap/logmap/distance kernels.
    """
    value = jnp.reshape(jnp.asarray(value, jnp.float32), (1,))
    ndim = x.ndim
    return pl.pallas_call(
        _curvature_scale_kernel,
        out_shape=jax.ShapeDtypeStruct(x.shape, x.dtype),
        in_specs=[
            pl.BlockSpec(memory_space=pltpu.MemorySpace.SMEM),
            pl.BlockSpec(x.shape, lambda: (0,) * ndim),
        ],
        out_specs=pl.BlockSpec(x.shape, lambda: (0,) * ndim),
    )(value, x)


if __name__ == "__main__":
    key = jax.random.PRNGKey(0)

    # Per-layer curvature parameters (hypll models hold one Curvature per
    # layer); batched into one lane-dense kernel launch.
    num_layers = 8
    values = 1.0 + 0.1 * jax.random.normal(key, (num_layers,), jnp.float32)

    curv = curvature_forward_batched(values)
    jax.block_until_ready(curv)
    ref = jnp.logaddexp(0.0, values)
    assert curv.shape == (num_layers,)
    assert curv.dtype == jnp.float32
    assert jnp.allclose(curv, ref, atol=1e-6), (curv, ref)

    # Single-scalar path — exact module semantics (default value=1.0).
    default_value = jnp.asarray(1.0, jnp.float32)
    c0 = curvature_forward(default_value)
    jax.block_until_ready(c0)
    assert c0.shape == ()
    assert c0.dtype == jnp.float32
    assert jnp.allclose(c0, jnp.logaddexp(0.0, 1.0), atol=1e-6), c0

    # Fused-consumer demo: softplus computed inside the downstream kernel.
    key_x = jax.random.split(key)[0]
    x = jax.random.normal(key_x, (8, 128), jnp.float32)
    y = curvature_scaled(default_value, x)
    jax.block_until_ready(y)
    y_ref = x * jnp.logaddexp(0.0, 1.0)
    assert jnp.allclose(y, y_ref, atol=1e-5), "fused consumer mismatch"

    print("KERNEL_OK")
</pallas_src>

<mosaic_0001>
module attributes {stable_mosaic.version = 11 : i64} {
  func.func @_softplus_kernel(%arg0: memref<1x128xf32, #tpu.memory_space<vmem>>, %arg1: memref<1x128xf32, #tpu.memory_space<vmem>>) attributes {dimension_semantics = [], scalar_prefetch = 0 : i64, scratch_operands = 0 : i64, tpu.core_type = #tpu.core_type<tc>} {
    %c0 = arith.constant 0 : index
    %c0_0 = arith.constant 0 : index
    %0 = vector.load %arg0[%c0, %c0_0] : memref<1x128xf32, #tpu.memory_space<vmem>>, vector<1x128xf32>
    %cst = arith.constant 0.000000e+00 : f32
    %1 = vector.broadcast %cst : f32 to vector<1x128xf32>
    %2 = arith.maximumf %0, %1 : vector<1x128xf32>
    %3 = math.absf %0 : vector<1x128xf32>
    %cst_1 = arith.constant 0.000000e+00 : f32
    %4 = vector.broadcast %cst_1 : f32 to vector<1x128xf32>
    %5 = arith.subf %4, %3 : vector<1x128xf32>
    %6 = math.exp %5 : vector<1x128xf32>
    %7 = math.log1p %6 : vector<1x128xf32>
    %8 = arith.addf %2, %7 : vector<1x128xf32>
    %c0_2 = arith.constant 0 : index
    %c0_3 = arith.constant 0 : index
    %9 = vector.load %arg1[%c0_2, %c0_3] : memref<1x128xf32, #tpu.memory_space<vmem>>, vector<1x128xf32>
    tpu.vector_store %arg1[%c0_2, %c0_3], %8 {strides = array<i32>} : memref<1x128xf32, #tpu.memory_space<vmem>>, vector<1x128xf32>,
    return
  }
}

</mosaic_0001>

<llo_original>
// kernel: tpu_custom_call.1
$region0: #{tpu_custom_call.1}
  #allocation0 [shape = 'u32[]', space=smem, size = 0x4, offset = 0x4, fixed_abs, tag = 'smem constant byte address 0x4 - core index']
  #allocation1 [shape = 'u32[144,128]{1,0:T(1,128)}', space=vmem, size = 0x12000, scoped, tag = 'internal scratch']
  %s0 = inlined_call_operand.hbm [shape: f32[1,128], index: 0, kind: input, shape index: {}]
  %s1 = inlined_call_operand.hbm [shape: f32[1,128], index: 1, kind: output, shape index: {}]
  %s2 = sld [smem:[#allocation0]]
  $region18: #{tpu_custom_call.1} parent=0
    _
  %s4 = ssub.s32 1, %s2
  %s5 = scalar_select 0, %s4, %s2
  $region1: #{tpu_custom_call.1} parent=0
    #allocation2 [shape = 'u8[512]{0}', space=vmem, size = 0x400, scoped, tag = 'input window, operand 0, single buffered']
    #allocation3 [shape = 's32[1]{0}', space=sflag, size = 0x4, scoped, tag = 'scoped memory for tpu_custom_call.1']
    #allocation4 [shape = 's32[1]{0}', space=sflag, size = 0x4, scoped, tag = 'scoped memory for tpu_custom_call.1']
    #allocation5 [shape = 'u8[512]{0}', space=vmem, size = 0x400, scoped, tag = 'output window, operand 0, single buffered']
    %6 = vsyncpa [#allocation3], 0
    %7 = vsyncpa [#allocation4], 0
    // Predicated region
    $region2: #{tpu_custom_call.1} parent=1 // pred_check
      _
    $region3: #{tpu_custom_call.1} parent=1 // pred_check_branch
      %9 = sbr.rel (0) target = $region5
    $region4: #{tpu_custom_call.1} parent=1 // pred_region
      %s11 = ssub.s32 16, 16
      %12 = vsyncadd [#allocation3], %s11
      %s14 = sshll.u32 [#allocation2], 4
      %s15 = int_to_ptr.vmem [resolvable:$true] %s14
      %17 = dma.hbm_to_vmem [thread:$0]  %s0, 16, %s15, [#allocation3]
    $region5: #{tpu_custom_call.1} parent=1 // pred_fallthru
      _
    // Predicated region
    $region6: #{tpu_custom_call.1} parent=1 // pred_check
      _
    $region7: #{tpu_custom_call.1} parent=1 // pred_check_branch
      %19 = sbr.rel (0) target = $region9
    $region8: #{tpu_custom_call.1} parent=1 // pred_region
      %20 = dma.done [#allocation3], 16
    $region9: #{tpu_custom_call.1} parent=1 // pred_fallthru
      _
    %v21 = vld [vmem:[#allocation2] sm:$0x1]
    %v22 = vmax.f32 %v21, 0.0
    %v23 = vand.u32 2147483647, %v21
    %v24 = vsub.f32 0.0, %v23
    %v25 = vmul.f32 %v24, 1.442695
    %v26 = vpow.pop %v25
    %v27 = vadd.f32 %v26, 1.0
    %v28 = vlog2.pop %v27
    %v29 = vmul.f32 %v28, 0.6931472
    %v30 = vmul.f32 -0.5, %v26
    %v31 = vadd.f32 %v30, 1.0
    %v32 = vmul.f32 %v31, %v26
    %v33 = vand.u32 2147483647, %v26
    %vm34 = vcmp.lt.f32.partialorder %v33, 0.0004427343
    %v35 = vsel %vm34, %v32, %v29
    %v36 = vadd.f32 %v22, %v35
    %37 = vst [vmem:[#allocation5] sm:$0x1] %v36
    // Predicated region
    $region10: #{tpu_custom_call.1} parent=1 // pred_check
      _
    $region11: #{tpu_custom_call.1} parent=1 // pred_check_branch
      %39 = sbr.rel (0) target = $region13
    $region12: #{tpu_custom_call.1} parent=1 // pred_region
      %s41 = ssub.s32 16, 16
      %42 = vsyncadd [#allocation4], %s41
      %s44 = sshll.u32 [#allocation5], 4
      %s45 = int_to_ptr.vmem [resolvable:$true] %s44
      %47 = dma.vmem_to_hbm [thread:$0]  %s45, 16, %s1, [#allocation4]
    $region13: #{tpu_custom_call.1} parent=1 // pred_fallthru
      _
    // Predicated region
    $region14: #{tpu_custom_call.1} parent=1 // pred_check
      _
    $region15: #{tpu_custom_call.1} parent=1 // pred_check_branch
      %49 = sbr.rel (0) target = $region17
    $region16: #{tpu_custom_call.1} parent=1 // pred_region
      %50 = dma.done [#allocation4], 16
    $region17: #{tpu_custom_call.1} parent=1 // pred_fallthru
      _
    %51 = vsyncpa [#allocation3], 1
    %52 = vsyncpa [#allocation4], 1

</llo_original>
